<compile_context>
chip_gen: v7x
topology: tpu7x:2x2x1
jax: 0.10.0
libtpu: 0.0.40
codegen_flags: <defaults>
</compile_context>

<pallas_src>
import jax
import jax.numpy as jnp
from jax.experimental import pallas as pl
from jax.experimental.pallas import tpu as pltpu

LANES = 128
SUBLANES = 8
MAX_BATCH_TILE = 1024   # rows per grid step; multiple of 128 for lane-dense output


def _round_up(x, m):
    return ((x + m - 1) // m) * m


def _linear_kernel(x_ref, p_ref, o_ref):
    """One batch tile of out = X @ W + b.

    x_ref : (TB, k_pad)        activations (f32 or bf16), lane-dense
    p_ref : (k_pad + 8, 128)   packed params: rows [0, k_pad) = W (lane 0 only),
                               row k_pad = bias (lane 0 only)
    o_ref : (TB // 128, 128)   lane-dense output: o[j, l] = out[j*128 + l]
    """
    k = p_ref.shape[0] - SUBLANES
    tb = x_ref.shape[0]

    x = x_ref[...]
    w = p_ref[pl.ds(0, k), :]                          # (k, 128), only lane 0 nonzero
    bias = p_ref[pl.ds(k, 1), :].astype(jnp.float32)   # (1, 128), only lane 0 nonzero

    # MXU matvec (broadcast over 128 lanes; only lane 0 carries the real weight).
    y = jnp.dot(x, w, preferred_element_type=jnp.float32) + bias   # (TB, 128)

    # Lane-densify: column 0 of each 128-row block becomes one 128-lane output
    # row via an XLU transpose (XLU slot is otherwise idle in this kernel).
    for j in range(tb // LANES):
        blk_t = y[j * LANES:(j + 1) * LANES, :].T      # (128, 128)
        o_ref[pl.ds(j, 1), :] = blk_t[0:1, :].astype(o_ref.dtype)


def pack_params(w, b, dtype=jnp.float32):
    """Pack Linear(n_inputs, 1) parameters into a single (k_pad + 8, 128) slab.

    w : (n_inputs, 1)  transposed PyTorch weight (layer.weight.T)
    b : (1,)           bias
    Call ONCE at model-init time; the slab is reused by every forward call.
    """
    n_in = int(w.shape[0])
    k_pad = _round_up(n_in, LANES)
    slab = jnp.zeros((k_pad + SUBLANES, LANES), dtype)
    slab = slab.at[:n_in, :1].set(w.astype(dtype))     # weight rows, lane 0
    slab = slab.at[k_pad, 0].set(b.astype(dtype)[0])   # bias row, lane 0
    return slab


def nn_1l_forward(x, packed):
    """NN_1l forward: (B, n_inputs) -> (B, 1)."""
    B, n_in = x.shape
    k_pad = packed.shape[0] - SUBLANES
    assert k_pad >= n_in and packed.dtype == x.dtype

    # --- batch tiling --------------------------------------------------------
    if B <= MAX_BATCH_TILE:
        b_pad = _round_up(max(B, 1), LANES)
        tb = b_pad
    else:
        tb = MAX_BATCH_TILE
        b_pad = _round_up(B, tb)
    grid = b_pad // tb

    # Pad X only when the caller's shape is unaligned (aligned production
    # shapes skip this extra HBM copy entirely).
    if b_pad != B or k_pad != n_in:
        x_in = jnp.zeros((b_pad, k_pad), x.dtype).at[:B, :n_in].set(x)
    else:
        x_in = x
    # TODO(synk): for very large n_inputs (k_pad tiles no longer fitting VMEM,
    # roughly > 8k on v7x), add a K grid axis ("arbitrary") with an f32
    # accumulator scratch instead of keeping the whole contraction resident.

    itemsize = jnp.dtype(x.dtype).itemsize
    out_rows = b_pad // LANES

    # Double-buffered X tiles + params + output, with headroom; < v7x's 64 MiB.
    vmem_need = (2 * tb * k_pad + 2 * (k_pad + SUBLANES) * LANES
                 + 2 * (tb // LANES) * LANES) * itemsize
    vmem_limit = int(min(60 * 2**20, max(16 * 2**20, 2 * vmem_need)))

    cost = pl.CostEstimate(
        flops=2 * b_pad * k_pad,
        transcendentals=0,
        bytes_accessed=(b_pad * k_pad + (k_pad + SUBLANES) * LANES
                        + out_rows * LANES) * itemsize,
    )

    out = pl.pallas_call(
        _linear_kernel,
        out_shape=jax.ShapeDtypeStruct((out_rows, LANES), x.dtype),
        grid=(grid,),
        in_specs=[
            pl.BlockSpec((tb, k_pad), lambda i: (i, 0)),                 # streamed X tile
            pl.BlockSpec((k_pad + SUBLANES, LANES), lambda i: (0, 0)),   # resident params
        ],
        out_specs=pl.BlockSpec((tb // LANES, LANES), lambda i: (i, 0)),
        compiler_params=pltpu.CompilerParams(
            dimension_semantics=("parallel",),
            vmem_limit_bytes=vmem_limit,
        ),
        cost_estimate=cost,
    )(x_in, packed)

    # (b_pad/128, 128) lane-dense slab -> flat rows -> (B, 1)
    return out.reshape(-1)[:B].reshape(B, 1)


if __name__ == "__main__":
    key = jax.random.PRNGKey(0)
    B, n_inputs = 8, 32

    kx, kw, kb = jax.random.split(key, 3)
    x = jax.random.normal(kx, (B, n_inputs), jnp.float32)

    # PyTorch-like init: xavier_uniform_ on weight, default uniform bias.
    bound_w = (6.0 / (n_inputs + 1)) ** 0.5
    w = jax.random.uniform(kw, (n_inputs, 1), jnp.float32, -bound_w, bound_w)
    bound_b = 1.0 / (n_inputs ** 0.5)
    b = jax.random.uniform(kb, (1,), jnp.float32, -bound_b, bound_b)

    packed = pack_params(w, b)              # hoisted one-time parameter packing
    fwd = jax.jit(nn_1l_forward)

    out = jax.block_until_ready(fwd(x, packed))

    ref = x @ w + b                          # pure-JAX reference of NN_1l.forward
    assert out.shape == (B, 1)
    assert jnp.allclose(out, ref, atol=1e-5, rtol=1e-5), "mismatch vs reference"
    print("KERNEL_OK")
</pallas_src>

<mosaic_0001>
module attributes {stable_mosaic.version = 11 : i64} {
  func.func @_linear_kernel(%arg0: i32, %arg1: memref<128x128xf32, #tpu.memory_space<vmem>>, %arg2: memref<136x128xf32, #tpu.memory_space<vmem>>, %arg3: memref<1x128xf32, #tpu.memory_space<vmem>>) attributes {dimension_semantics = [#tpu.dimension_semantics<parallel>], iteration_bounds = array<i64: 1>, scalar_prefetch = 0 : i64, scratch_operands = 0 : i64, tpu.core_type = #tpu.core_type<tc>, window_params = [{transform_indices = @transform_0, window_bounds = array<i64: 128, 128>}, {pipeline_mode = #tpu.pipeline_mode<synchronous>, transform_indices = @transform_1, window_bounds = array<i64: 136, 128>}, {transform_indices = @transform_2, window_bounds = array<i64: 1, 128>}]} {
    %c0 = arith.constant 0 : index
    %c0_0 = arith.constant 0 : index
    %0 = vector.load %arg1[%c0, %c0_0] : memref<128x128xf32, #tpu.memory_space<vmem>>, vector<128x128xf32>
    %c0_1 = arith.constant 0 : index
    %c0_2 = arith.constant 0 : index
    %1 = vector.load %arg2[%c0_1, %c0_2] : memref<136x128xf32, #tpu.memory_space<vmem>>, vector<128x128xf32>
    %c128 = arith.constant 128 : index
    %c0_3 = arith.constant 0 : index
    %2 = vector.load %arg2[%c128, %c0_3] : memref<136x128xf32, #tpu.memory_space<vmem>>, vector<1x128xf32>
    %cst = arith.constant dense<0.000000e+00> : vector<128x128xf32>
    %3 = tpu.matmul %0, %1, %cst {dimension_numbers = #tpu.dot_dimension_numbers<[1], [0], [0], [1], [0, 0, 1, 1], [], []>} : vector<128x128xf32>, vector<128x128xf32>, vector<128x128xf32> -> vector<128x128xf32>
    %4 = vector.broadcast %2 : vector<1x128xf32> to vector<128x128xf32>
    %5 = arith.addf %3, %4 : vector<128x128xf32>
    %6 = tpu.transpose %5, [1, 0] : vector<128x128xf32> -> vector<128x128xf32>
    %7 = vector.extract_strided_slice %6 {offsets = [0, 0], sizes = [1, 128], strides = [1, 1]} : vector<128x128xf32> to vector<1x128xf32>
    %c0_4 = arith.constant 0 : index
    %c0_5 = arith.constant 0 : index
    %8 = vector.load %arg3[%c0_4, %c0_5] : memref<1x128xf32, #tpu.memory_space<vmem>>, vector<1x128xf32>
    tpu.vector_store %arg3[%c0_4, %c0_5], %7 {strides = array<i32>} : memref<1x128xf32, #tpu.memory_space<vmem>>, vector<1x128xf32>,
    return
  }
  func.func @transform_0(%arg0: i32) -> (i32, i32) {
    %c0_i32 = arith.constant 0 : i32
    %c0_i32_0 = arith.constant 0 : i32
    return %arg0, %c0_i32 : i32, i32
  }
  func.func @transform_1(%arg0: i32) -> (i32, i32) {
    %c0_i32 = arith.constant 0 : i32
    %c0_i32_0 = arith.constant 0 : i32
    %c0_i32_1 = arith.constant 0 : i32
    return %c0_i32, %c0_i32_0 : i32, i32
  }
  func.func @transform_2(%arg0: i32) -> (i32, i32) {
    %c0_i32 = arith.constant 0 : i32
    %c0_i32_0 = arith.constant 0 : i32
    return %arg0, %c0_i32 : i32, i32
  }
}

</mosaic_0001>

<llo_original>
// kernel: nn_1l_forward.1
$region0: #{nn_1l_forward.1}
  #allocation0 [shape = 'u32[]', space=smem, size = 0x4, offset = 0x4, fixed_abs, tag = 'smem constant byte address 0x4 - core index']
  #allocation1 [shape = 'u32[144,128]{1,0:T(1,128)}', space=vmem, size = 0x12000, scoped, tag = 'internal scratch']
  %s0 = inlined_call_operand.vmem [shape: f32[128,128], index: 0, kind: input, shape index: {}]
  %s1 = inlined_call_operand.vmem [shape: f32[136,128], index: 1, kind: input, shape index: {}]
  %s2 = inlined_call_operand.vmem [shape: f32[1,128], index: 2, kind: output, shape index: {}]
  %s3 = sld [smem:[#allocation0]]
  $region18: #{nn_1l_forward.1} parent=0
    _
  %s5 = ssub.s32 1, %s3
  %s6 = scalar_select 0, %s5, %s3
  // Predicated region
  $region2: #{nn_1l_forward.1} parent=0 // pred_check
    _
  $region3: #{nn_1l_forward.1} parent=0 // pred_check_branch
    %8 = sbr.rel (0) target = $region5
  $region4: #{nn_1l_forward.1} parent=0 // pred_region
    _
  $region5: #{nn_1l_forward.1} parent=0 // pred_fallthru
    _
  // Predicated region
  $region6: #{nn_1l_forward.1} parent=0 // pred_check
    _
  $region7: #{nn_1l_forward.1} parent=0 // pred_check_branch
    %10 = sbr.rel (0) target = $region9
  $region8: #{nn_1l_forward.1} parent=0 // pred_region
    _
  $region9: #{nn_1l_forward.1} parent=0 // pred_fallthru
    _
  %v11 = vld [vmem:[%s0] sm:$0xff]
  %v12 = vld [vmem:[%s0 + $0x8] sm:$0xff]
  %v13 = vld [vmem:[%s0 + $0x10] sm:$0xff]
  %v14 = vld [vmem:[%s0 + $0x18] sm:$0xff]
  %v15 = vld [vmem:[%s0 + $0x20] sm:$0xff]
  %v16 = vld [vmem:[%s0 + $0x28] sm:$0xff]
  %v17 = vld [vmem:[%s0 + $0x30] sm:$0xff]
  %v18 = vld [vmem:[%s0 + $0x38] sm:$0xff]
  %v19 = vld [vmem:[%s0 + $0x40] sm:$0xff]
  %v20 = vld [vmem:[%s0 + $0x48] sm:$0xff]
  %v21 = vld [vmem:[%s0 + $0x50] sm:$0xff]
  %v22 = vld [vmem:[%s0 + $0x58] sm:$0xff]
  %v23 = vld [vmem:[%s0 + $0x60] sm:$0xff]
  %v24 = vld [vmem:[%s0 + $0x68] sm:$0xff]
  %v25 = vld [vmem:[%s0 + $0x70] sm:$0xff]
  %v26 = vld [vmem:[%s0 + $0x78] sm:$0xff]
  %v27 = vld [vmem:[%s1] sm:$0xff]
  %v28 = vld [vmem:[%s1 + $0x8] sm:$0xff]
  %v29 = vld [vmem:[%s1 + $0x10] sm:$0xff]
  %v30 = vld [vmem:[%s1 + $0x18] sm:$0xff]
  %v31 = vld [vmem:[%s1 + $0x20] sm:$0xff]
  %v32 = vld [vmem:[%s1 + $0x28] sm:$0xff]
  %v33 = vld [vmem:[%s1 + $0x30] sm:$0xff]
  %v34 = vld [vmem:[%s1 + $0x38] sm:$0xff]
  %v35 = vld [vmem:[%s1 + $0x40] sm:$0xff]
  %v36 = vld [vmem:[%s1 + $0x48] sm:$0xff]
  %v37 = vld [vmem:[%s1 + $0x50] sm:$0xff]
  %v38 = vld [vmem:[%s1 + $0x58] sm:$0xff]
  %v39 = vld [vmem:[%s1 + $0x60] sm:$0xff]
  %v40 = vld [vmem:[%s1 + $0x68] sm:$0xff]
  %v41 = vld [vmem:[%s1 + $0x70] sm:$0xff]
  %v42 = vld [vmem:[%s1 + $0x78] sm:$0xff]
  %v43 = vld [vmem:[%s1 + $0x80] sm:$0x1]
  %v44 = vlaneseq
  %v45 = vshrl.u32 %v44, 7
  %v46 = vsub.s32 0, %v45
  %v47 = vrot.slane %v43, %v46
  %48 = vmatprep.subr.mxu0 0.0
  %49 = vmatpush1.msra.mxu0 %v27
  %50 = vmatprep.subr.mxu0 0.0
  %51 = vmatpush1.msra.mxu0 %v28
  %52 = vmatprep.subr.mxu0 0.0
  %53 = vmatpush1.msra.mxu0 %v29
  %54 = vmatprep.subr.mxu0 0.0
  %55 = vmatpush1.msra.mxu0 %v30
  %56 = vmatprep.subr.mxu0 0.0
  %57 = vmatpush1.msra.mxu0 %v31
  %58 = vmatprep.subr.mxu0 0.0
  %59 = vmatpush1.msra.mxu0 %v32
  %60 = vmatprep.subr.mxu0 0.0
  %61 = vmatpush1.msra.mxu0 %v33
  %62 = vmatprep.subr.mxu0 0.0
  %63 = vmatpush1.msra.mxu0 %v34
  %64 = vmatprep.subr.mxu0 0.0
  %65 = vmatpush1.msra.mxu0 %v35
  %66 = vmatprep.subr.mxu0 0.0
  %67 = vmatpush1.msra.mxu0 %v36
  %68 = vmatprep.subr.mxu0 0.0
  %69 = vmatpush1.msra.mxu0 %v37
  %70 = vmatprep.subr.mxu0 0.0
  %71 = vmatpush1.msra.mxu0 %v38
  %72 = vmatprep.subr.mxu0 0.0
  %73 = vmatpush1.msra.mxu0 %v39
  %74 = vmatprep.subr.mxu0 0.0
  %75 = vmatpush1.msra.mxu0 %v40
  %76 = vmatprep.subr.mxu0 0.0
  %77 = vmatpush1.msra.mxu0 %v41
  %78 = vmatprep.subr.mxu0 0.0
  %79 = vmatpush1.msra.mxu0 %v42
  %80 = vmatprep.subr.mxu0 0.0
  %81 = vmatpush1.msra.mxu0 0.0
  %82 = vmatprep.subr.mxu0 0.0
  %83 = vmatpush1.msra.mxu0 0.0
  %84 = vmatprep.subr.mxu0 0.0
  %85 = vmatpush1.msra.mxu0 0.0
  %86 = vmatprep.subr.mxu0 0.0
  %87 = vmatpush1.msra.mxu0 0.0
  %88 = vmatprep.subr.mxu0 0.0
  %89 = vmatpush1.msra.mxu0 0.0
  %90 = vmatprep.subr.mxu0 0.0
  %91 = vmatpush1.msra.mxu0 0.0
  %92 = vmatprep.subr.mxu0 0.0
  %93 = vmatpush1.msra.mxu0 0.0
  %94 = vmatprep.subr.mxu0 0.0
  %95 = vmatpush1.msra.mxu0 0.0
  %96 = vmatprep.subr.mxu0 0.0
  %97 = vmatpush1.msra.mxu0 0.0
  %98 = vmatprep.subr.mxu0 0.0
  %99 = vmatpush1.msra.mxu0 0.0
  %100 = vmatprep.subr.mxu0 0.0
  %101 = vmatpush1.msra.mxu0 0.0
  %102 = vmatprep.subr.mxu0 0.0
  %103 = vmatpush1.msra.mxu0 0.0
  %104 = vmatprep.subr.mxu0 0.0
  %105 = vmatpush1.msra.mxu0 0.0
  %106 = vmatprep.subr.mxu0 0.0
  %107 = vmatpush1.msra.mxu0 0.0
  %108 = vmatprep.subr.mxu0 0.0
  %109 = vmatpush1.msra.mxu0 0.0
  %110 = vmatprep.subr.mxu0 0.0
  %111 = vmatpush1.msra.mxu0 0.0
  %112 = vmatprep.mubr.f32.mxu0 0.0
  %113 = vmatmul.mubr.f32.gmra.mrb[0].mxu0 %v11
  %v114 = vpop.f32.mrb[0].mxu0
  %v115 = vadd.f32 %v47, %v114
  %v116 = vpop.f32.mrb[0].mxu0
  %117 = vmatprep.mubr.f32.mxu0 0.0
  %118 = vmatmul.mubr.f32.gmra.mrb[0].mxu0 %v12
  %v119 = vpop.f32.mrb[0].mxu0
  %v120 = vadd.f32 %v47, %v119
  %v121 = vpop.f32.mrb[0].mxu0
  %122 = vmatprep.mubr.f32.mxu0 0.0
  %123 = vmatmul.mubr.f32.gmra.mrb[0].mxu0 %v13
  %v124 = vpop.f32.mrb[0].mxu0
  %v125 = vadd.f32 %v47, %v124
  %v126 = vpop.f32.mrb[0].mxu0
  %127 = vmatprep.mubr.f32.mxu0 0.0
  %128 = vmatmul.mubr.f32.gmra.mrb[0].mxu0 %v14
  %v129 = vpop.f32.mrb[0].mxu0
  %v130 = vadd.f32 %v47, %v129
  %v131 = vpop.f32.mrb[0].mxu0
  %132 = vmatprep.mubr.f32.mxu0 0.0
  %133 = vmatmul.mubr.f32.gmra.mrb[0].mxu0 %v15
  %v134 = vpop.f32.mrb[0].mxu0
  %v135 = vadd.f32 %v47, %v134
  %v136 = vpop.f32.mrb[0].mxu0
  %137 = vmatprep.mubr.f32.mxu0 0.0
  %138 = vmatmul.mubr.f32.gmra.mrb[0].mxu0 %v16
  %v139 = vpop.f32.mrb[0].mxu0
  %v140 = vadd.f32 %v47, %v139
  %v141 = vpop.f32.mrb[0].mxu0
  %142 = vmatprep.mubr.f32.mxu0 0.0
  %143 = vmatmul.mubr.f32.gmra.mrb[0].mxu0 %v17
  %v144 = vpop.f32.mrb[0].mxu0
  %v145 = vadd.f32 %v47, %v144
  %v146 = vpop.f32.mrb[0].mxu0
  %147 = vmatprep.mubr.f32.mxu0 0.0
  %148 = vmatmul.mubr.f32.gmra.mrb[0].mxu0 %v18
  %v149 = vpop.f32.mrb[0].mxu0
  %v150 = vadd.f32 %v47, %v149
  %v151 = vpop.f32.mrb[0].mxu0
  %152 = vmatprep.mubr.f32.mxu0 0.0
  %153 = vmatmul.mubr.f32.gmra.mrb[0].mxu0 %v19
  %v154 = vpop.f32.mrb[0].mxu0
  %v155 = vadd.f32 %v47, %v154
  %v156 = vpop.f32.mrb[0].mxu0
  %157 = vmatprep.mubr.f32.mxu0 0.0
  %158 = vmatmul.mubr.f32.gmra.mrb[0].mxu0 %v20
  %v159 = vpop.f32.mrb[0].mxu0
  %v160 = vadd.f32 %v47, %v159
  %v161 = vpop.f32.mrb[0].mxu0
  %162 = vmatprep.mubr.f32.mxu0 0.0
  %163 = vmatmul.mubr.f32.gmra.mrb[0].mxu0 %v21
  %v164 = vpop.f32.mrb[0].mxu0
  %v165 = vadd.f32 %v47, %v164
  %v166 = vpop.f32.mrb[0].mxu0
  %167 = vmatprep.mubr.f32.mxu0 0.0
  %168 = vmatmul.mubr.f32.gmra.mrb[0].mxu0 %v22
  %v169 = vpop.f32.mrb[0].mxu0
  %v170 = vadd.f32 %v47, %v169
  %v171 = vpop.f32.mrb[0].mxu0
  %172 = vmatprep.mubr.f32.mxu0 0.0
  %173 = vmatmul.mubr.f32.gmra.mrb[0].mxu0 %v23
  %v174 = vpop.f32.mrb[0].mxu0
  %v175 = vadd.f32 %v47, %v174
  %v176 = vpop.f32.mrb[0].mxu0
  %177 = vmatprep.mubr.f32.mxu0 0.0
  %178 = vmatmul.mubr.f32.gmra.mrb[0].mxu0 %v24
  %v179 = vpop.f32.mrb[0].mxu0
  %v180 = vadd.f32 %v47, %v179
  %v181 = vpop.f32.mrb[0].mxu0
  %182 = vmatprep.mubr.f32.mxu0 0.0
  %183 = vmatmul.mubr.f32.gmra.mrb[0].mxu0 %v25
  %v184 = vpop.f32.mrb[0].mxu0
  %v185 = vadd.f32 %v47, %v184
  %v186 = vpop.f32.mrb[0].mxu0
  %187 = vmatprep.mubr.f32.mxu0 0.0
  %188 = vmatmul.mubr.f32.gmra.mrb[0].mxu0 %v26
  %v189 = vpop.f32.mrb[0].mxu0
  %v190 = vadd.f32 %v47, %v189
  %v191 = vpop.f32.mrb[0].mxu0
  %192 = vdwg.mxu0
  %193 = vxpose.xlu0.b32.start [1/16] %v115, 128
  %194 = vxpose.xlu0.b32.cont [2/16] %v120, 128
  %195 = vxpose.xlu0.b32.cont [3/16] %v125, 128
  %196 = vxpose.xlu0.b32.cont [4/16] %v130, 128
  %197 = vxpose.xlu0.b32.cont [5/16] %v135, 128
  %198 = vxpose.xlu0.b32.cont [6/16] %v140, 128
  %199 = vxpose.xlu0.b32.cont [7/16] %v145, 128
  %200 = vxpose.xlu0.b32.cont [8/16] %v150, 128
  %201 = vxpose.xlu0.b32.cont [9/16] %v155, 128
  %202 = vxpose.xlu0.b32.cont [10/16] %v160, 128
  %203 = vxpose.xlu0.b32.cont [11/16] %v165, 128
  %204 = vxpose.xlu0.b32.cont [12/16] %v170, 128
  %205 = vxpose.xlu0.b32.cont [13/16] %v175, 128
  %206 = vxpose.xlu0.b32.cont [14/16] %v180, 128
  %207 = vxpose.xlu0.b32.cont [15/16] %v185, 128
  %208 = vxpose.xlu0.b32.end [16/16] %v190, 128
  %v209 = vpop.trf.xlu0
  %v210 = vpop.trf.xlu0
  %v211 = vpop.trf.xlu0
  %v212 = vpop.trf.xlu0
  %v213 = vpop.trf.xlu0
  %v214 = vpop.trf.xlu0
  %v215 = vpop.trf.xlu0
  %v216 = vpop.trf.xlu0
  %v217 = vpop.trf.xlu0
  %v218 = vpop.trf.xlu0
  %v219 = vpop.trf.xlu0
  %v220 = vpop.trf.xlu0
  %v221 = vpop.trf.xlu0
  %v222 = vpop.trf.xlu0
  %v223 = vpop.trf.xlu0
  %v224 = vpop.trf.xlu0
  %225 = vst [vmem:[%s2] sm:$0x1] %v209
  // Predicated region
  $region10: #{nn_1l_forward.1} parent=0 // pred_check
    _
  $region11: #{nn_1l_forward.1} parent=0 // pred_check_branch
    %227 = sbr.rel (0) target = $region13
  $region12: #{nn_1l_forward.1} parent=0 // pred_region
    _
  $region13: #{nn_1l_forward.1} parent=0 // pred_fallthru
    _
  // Predicated region
  $region14: #{nn_1l_forward.1} parent=0 // pred_check
    _
  $region15: #{nn_1l_forward.1} parent=0 // pred_check_branch
    %229 = sbr.rel (0) target = $region17
  $region16: #{nn_1l_forward.1} parent=0 // pred_region
    _
  $region17: #{nn_1l_forward.1} parent=0 // pred_fallthru
    _

</llo_original>
